<compile_context>
chip_gen: v7x
topology: tpu7x:2x2x1
jax: 0.10.0
libtpu: 0.0.40
codegen_flags: <defaults>
</compile_context>

<pallas_src>
import jax
import jax.numpy as jnp
from jax.experimental import pallas as pl
from jax.experimental.pallas import tpu as pltpu


# Below this many total bytes the fixed custom-call cost dominates and a fused
# XLA broadcast-add is strictly faster (and can fuse into neighboring ops).
_PALLAS_MIN_BYTES = 2 * 1024 * 1024


def _add_prompt_kernel(x_ref, p_ref, o_ref):
    # x_ref: (Bt, L) batch tile; p_ref: (1, L) shared prompt (broadcast add).
    o_ref[...] = x_ref[...] + p_ref[...]


def _sublane_multiple(dtype):
    """Native sublane packing for the dtype: 8 for 4-byte, 16 for 2-byte, 32 for 1-byte."""
    itemsize = jnp.dtype(dtype).itemsize
    return max(8, 32 // max(1, itemsize))


def _pick_batch_tile(
    batch,
    row_elems,
    dtype,
    *,
    target_bytes=8 * 1024 * 1024,     # ~8 MiB per block (review: amortize per-step cost on v7x)
    max_block_bytes=12 * 1024 * 1024, # never exceed ~12 MiB (4x double-buffering must fit VMEM)
    min_grid_steps=4,                 # keep >=4 blocks so both v7x TCs get work
    small_total_bytes=2 * 1024 * 1024,
):
    """Choose how many flattened images (rows) go into one block."""
    itemsize = jnp.dtype(dtype).itemsize
    sub = _sublane_multiple(dtype)
    row_bytes = row_elems * itemsize
    total_bytes = batch * row_bytes

    if total_bytes <= small_total_bytes:
        # Too small to be worth splitting: one block covering the whole batch.
        # Block dim == full array dim, so no sublane-divisibility rule applies.
        return batch

    # Rows implied by the per-block byte target ...
    rows = max(1, target_bytes // max(1, row_bytes))
    # ... capped so the grid has at least `min_grid_steps` blocks.
    rows = min(rows, -(-batch // min_grid_steps))  # cdiv(batch, min_grid_steps)

    # Round to the dtype's native sublane packing (block sublane dim must be a
    # multiple of `sub` unless it equals the full batch).  Prefer rounding up
    # (closer to the byte target) as long as the block stays under the cap.
    rows_up = -(-rows // sub) * sub
    if rows_up * row_bytes <= max_block_bytes:
        rows = rows_up
    else:
        rows = max(sub, (rows // sub) * sub)

    # NOTE: for pathologically large single images (row_bytes >~ 1.5 MiB) the
    # minimum legal tile (`sub` rows) can still be large; realistic prompter
    # image sizes (<= 336px) keep 4 * tile well under 64 MiB VMEM.
    return min(rows, batch)


def cross_prompter_forward(
    x,
    pad_vertical,
    pad_horizontal,
    *,
    image_size,
    pad_size,
    use_pallas=None,   # None = auto (XLA fast path for tiny inputs), True/False to force
    donate_x=False,    # set True only if the caller actually donates x
):
    """x: (B, 3, H, W); pad_vertical: (1, 3, H, 2p); pad_horizontal: (1, 3, 2p, W)."""
    B, C, H, W = x.shape
    assert (C, H, W) == (3, image_size, image_size)
    mid = image_size // 2

    # Build the merged prompt ONCE in the wrapper (tiny (1,3,H,W) array).
    # Horizontal band overwrites the vertical band, same as the PyTorch code.
    prompt = jnp.zeros((1, 3, image_size, image_size), dtype=x.dtype)
    prompt = prompt.at[:, :, :, mid - pad_size : mid + pad_size].set(
        pad_vertical.astype(x.dtype)
    )
    prompt = prompt.at[:, :, mid - pad_size : mid + pad_size, :].set(
        pad_horizontal.astype(x.dtype)
    )

    # Lane-dense flatten: last dim is 3*H*W (full array extent, so the layout
    # rule is satisfied even when it is not a multiple of 128).
    L = C * H * W
    x2 = x.reshape(B, L)
    p2 = prompt.reshape(1, L)

    itemsize = jnp.dtype(x.dtype).itemsize
    total_bytes = B * L * itemsize

    if use_pallas is None:
        use_pallas = total_bytes >= _PALLAS_MIN_BYTES
    if not use_pallas:
        # Launch-latency-bound regime: plain XLA broadcast-add is faster.
        return (x2 + p2).reshape(B, C, H, W)

    Bt = _pick_batch_tile(B, L, x.dtype)
    grid = (pl.cdiv(B, Bt),)

    # VMEM budget derived from the chosen tile:
    #   double-buffered x tile + double-buffered out tile + prompt (+ slack).
    tile_bytes = Bt * L * itemsize
    prompt_bytes = L * itemsize
    vmem_limit = 2 * 2 * tile_bytes + 2 * prompt_bytes + (2 << 20)
    vmem_limit = int(min(max(vmem_limit, 8 << 20), 60 << 20))

    out2 = pl.pallas_call(
        _add_prompt_kernel,
        out_shape=jax.ShapeDtypeStruct((B, L), x.dtype),
        grid_spec=pltpu.PrefetchScalarGridSpec(
            num_scalar_prefetch=0,
            grid=grid,
            in_specs=[
                # x: batch tile streamed per grid step (double-buffered).
                pl.BlockSpec((Bt, L), lambda i: (i, 0)),
                # merged prompt: block index never changes -> single buffer.
                pl.BlockSpec((1, L), lambda i: (0, 0), pipeline_mode=pl.Buffered(1)),
            ],
            out_specs=pl.BlockSpec((Bt, L), lambda i: (i, 0)),
        ),
        compiler_params=pltpu.CompilerParams(
            dimension_semantics=("parallel",),
            vmem_limit_bytes=vmem_limit,
        ),
        input_output_aliases=({0: 0} if donate_x else {}),
    )(x2, p2)

    return out2.reshape(B, C, H, W)


def reference_forward(x, pad_vertical, pad_horizontal, *, image_size, pad_size):
    mid = image_size // 2
    prompt = jnp.zeros((1, 3, image_size, image_size), dtype=x.dtype)
    prompt = prompt.at[:, :, :, mid - pad_size : mid + pad_size].set(
        pad_vertical.astype(x.dtype)
    )
    prompt = prompt.at[:, :, mid - pad_size : mid + pad_size, :].set(
        pad_horizontal.astype(x.dtype)
    )
    return x + jnp.tile(prompt, (x.shape[0], 1, 1, 1))


if __name__ == "__main__":
    image_size = 16
    pad_size = 2   # args.prompt_size
    batch = 2

    key = jax.random.PRNGKey(0)
    k_x, k_v, k_h = jax.random.split(key, 3)

    x = jax.random.normal(k_x, (batch, 3, image_size, image_size), dtype=jnp.float32)
    # nn.Parameter(torch.randn(...)) -> deterministic normal init in-script.
    pad_vertical = jax.random.normal(
        k_v, (1, 3, image_size, 2 * pad_size), dtype=jnp.float32
    )
    pad_horizontal = jax.random.normal(
        k_h, (1, 3, 2 * pad_size, image_size), dtype=jnp.float32
    )

    ref = reference_forward(
        x, pad_vertical, pad_horizontal, image_size=image_size, pad_size=pad_size
    )

    # 1) Force the Pallas kernel at the small demo shape.
    out = cross_prompter_forward(
        x, pad_vertical, pad_horizontal,
        image_size=image_size, pad_size=pad_size, use_pallas=True,
    )
    out = jax.block_until_ready(out)
    assert out.shape == ref.shape and out.dtype == ref.dtype
    assert bool(jnp.allclose(out, ref, atol=1e-6, rtol=1e-6))

    # 2) Auto dispatch: this tiny input takes the fused-XLA fast path.
    out_auto = jax.block_until_ready(
        cross_prompter_forward(
            x, pad_vertical, pad_horizontal,
            image_size=image_size, pad_size=pad_size,
        )
    )
    assert bool(jnp.allclose(out_auto, ref, atol=1e-6, rtol=1e-6))

    # 3) bf16 batch through the kernel (exercises the dtype-aware tiling path).
    batch2 = 32
    xb = jax.random.normal(
        k_x, (batch2, 3, image_size, image_size), dtype=jnp.bfloat16
    )
    pv_b = pad_vertical.astype(jnp.bfloat16)
    ph_b = pad_horizontal.astype(jnp.bfloat16)
    refb = reference_forward(
        xb, pv_b, ph_b, image_size=image_size, pad_size=pad_size
    )
    outb = jax.block_until_ready(
        cross_prompter_forward(
            xb, pv_b, ph_b,
            image_size=image_size, pad_size=pad_size, use_pallas=True,
        )
    )
    assert outb.shape == refb.shape and outb.dtype == refb.dtype
    assert bool(
        jnp.allclose(
            outb.astype(jnp.float32), refb.astype(jnp.float32), atol=1e-2, rtol=1e-2
        )
    )

    print("KERNEL_OK")
</pallas_src>

<mosaic_0001>
module attributes {stable_mosaic.version = 11 : i64} {
  func.func @_add_prompt_kernel(%arg0: i32, %arg1: memref<2x768xf32, #tpu.memory_space<vmem>>, %arg2: memref<1x768xf32, #tpu.memory_space<vmem>>, %arg3: memref<2x768xf32, #tpu.memory_space<vmem>>) attributes {dimension_semantics = [#tpu.dimension_semantics<parallel>], iteration_bounds = array<i64: 1>, scalar_prefetch = 0 : i64, scratch_operands = 0 : i64, tpu.core_type = #tpu.core_type<tc>, window_params = [{transform_indices = @transform_0, window_bounds = array<i64: 2, 768>}, {pipeline_mode = #tpu.pipeline_mode<synchronous>, transform_indices = @transform_1, window_bounds = array<i64: 1, 768>}, {transform_indices = @transform_2, window_bounds = array<i64: 2, 768>}]} {
    %c0 = arith.constant 0 : index
    %c0_0 = arith.constant 0 : index
    %0 = vector.load %arg1[%c0, %c0_0] : memref<2x768xf32, #tpu.memory_space<vmem>>, vector<2x768xf32>
    %c0_1 = arith.constant 0 : index
    %c0_2 = arith.constant 0 : index
    %1 = vector.load %arg2[%c0_1, %c0_2] : memref<1x768xf32, #tpu.memory_space<vmem>>, vector<1x768xf32>
    %2 = vector.broadcast %1 : vector<1x768xf32> to vector<2x768xf32>
    %3 = arith.addf %0, %2 : vector<2x768xf32>
    %c0_3 = arith.constant 0 : index
    %c0_4 = arith.constant 0 : index
    %4 = vector.load %arg3[%c0_3, %c0_4] : memref<2x768xf32, #tpu.memory_space<vmem>>, vector<2x768xf32>
    tpu.vector_store %arg3[%c0_3, %c0_4], %3 {strides = array<i32>} : memref<2x768xf32, #tpu.memory_space<vmem>>, vector<2x768xf32>,
    return
  }
  func.func @transform_0(%arg0: i32) -> (i32, i32) {
    %c0_i32 = arith.constant 0 : i32
    %c0_i32_0 = arith.constant 0 : i32
    return %arg0, %c0_i32 : i32, i32
  }
  func.func @transform_1(%arg0: i32) -> (i32, i32) {
    %c0_i32 = arith.constant 0 : i32
    %c0_i32_0 = arith.constant 0 : i32
    %c0_i32_1 = arith.constant 0 : i32
    return %c0_i32, %c0_i32_0 : i32, i32
  }
  func.func @transform_2(%arg0: i32) -> (i32, i32) {
    %c0_i32 = arith.constant 0 : i32
    %c0_i32_0 = arith.constant 0 : i32
    return %arg0, %c0_i32 : i32, i32
  }
}

</mosaic_0001>

<llo_original>
// kernel: tpu_custom_call.1
$region0: #{tpu_custom_call.1}
  #allocation0 [shape = 'u32[]', space=smem, size = 0x4, offset = 0x4, fixed_abs, tag = 'smem constant byte address 0x4 - core index']
  #allocation1 [shape = 'u32[144,128]{1,0:T(1,128)}', space=vmem, size = 0x12000, scoped, tag = 'internal scratch']
  %s0 = inlined_call_operand.hbm [shape: f32[2,768], index: 0, kind: input, shape index: {}]
  %s1 = inlined_call_operand.hbm [shape: f32[1,768], index: 1, kind: input, shape index: {}]
  %s2 = inlined_call_operand.hbm [shape: f32[2,768], index: 2, kind: output, shape index: {}]
  %s3 = sld [smem:[#allocation0]]
  $region26: #{tpu_custom_call.1} parent=0
    _
  %s5 = ssub.s32 1, %s3
  %s6 = scalar_select 0, %s5, %s3
  $region1: #{tpu_custom_call.1} parent=0
    #allocation2 [shape = 'u8[6144]{0}', space=vmem, size = 0x1800, scoped, tag = 'input window, operand 0, single buffered']
    #allocation3 [shape = 's32[1]{0}', space=sflag, size = 0x4, scoped, tag = 'scoped memory for tpu_custom_call.1']
    #allocation4 [shape = 's32[1]{0}', space=sflag, size = 0x4, scoped, tag = 'scoped memory for tpu_custom_call.1']
    #allocation5 [shape = 'u8[3072]{0}', space=vmem, size = 0xc00, scoped, tag = 'input window, operand 1, single buffered']
    #allocation6 [shape = 's32[1]{0}', space=sflag, size = 0x4, scoped, tag = 'scoped memory for tpu_custom_call.1']
    #allocation7 [shape = 'u8[6144]{0}', space=vmem, size = 0x1800, scoped, tag = 'output window, operand 0, single buffered']
    %7 = vsyncpa [#allocation3], 0
    %8 = vsyncpa [#allocation6], 0
    %9 = vsyncpa [#allocation4], 0
    // Predicated region
    $region2: #{tpu_custom_call.1} parent=1 // pred_check
      _
    $region3: #{tpu_custom_call.1} parent=1 // pred_check_branch
      %11 = sbr.rel (0) target = $region5
    $region4: #{tpu_custom_call.1} parent=1 // pred_region
      %s13 = ssub.s32 192, 192
      %14 = vsyncadd [#allocation3], %s13
      %s16 = sshll.u32 [#allocation2], 4
      %s17 = int_to_ptr.vmem [resolvable:$true] %s16
      %19 = dma.hbm_to_vmem [thread:$0]  %s0, 192, %s17, [#allocation3]
    $region5: #{tpu_custom_call.1} parent=1 // pred_fallthru
      _
    // Predicated region
    $region6: #{tpu_custom_call.1} parent=1 // pred_check
      _
    $region7: #{tpu_custom_call.1} parent=1 // pred_check_branch
      %21 = sbr.rel (0) target = $region9
    $region8: #{tpu_custom_call.1} parent=1 // pred_region
      %s23 = ssub.s32 96, 96
      %24 = vsyncadd [#allocation6], %s23
      %s26 = sshll.u32 [#allocation5], 4
      %s27 = int_to_ptr.vmem [resolvable:$true] %s26
      %29 = dma.hbm_to_vmem [thread:$0]  %s1, 96, %s27, [#allocation6]
    $region9: #{tpu_custom_call.1} parent=1 // pred_fallthru
      _
    // Predicated region
    $region10: #{tpu_custom_call.1} parent=1 // pred_check
      _
    $region11: #{tpu_custom_call.1} parent=1 // pred_check_branch
      %31 = sbr.rel (0) target = $region13
    $region12: #{tpu_custom_call.1} parent=1 // pred_region
      %32 = dma.done [#allocation3], 192
    $region13: #{tpu_custom_call.1} parent=1 // pred_fallthru
      _
    // Predicated region
    $region14: #{tpu_custom_call.1} parent=1 // pred_check
      _
    $region15: #{tpu_custom_call.1} parent=1 // pred_check_branch
      %34 = sbr.rel (0) target = $region17
    $region16: #{tpu_custom_call.1} parent=1 // pred_region
      %35 = dma.done [#allocation6], 96
    $region17: #{tpu_custom_call.1} parent=1 // pred_fallthru
      _
    %v36 = vld [vmem:[#allocation2] sm:$0xff]
    %v37 = vld [vmem:[#allocation2 + $0x8] sm:$0xf]
    %v38 = vld [vmem:[#allocation5] sm:$0x3f]
    %v40 = vlaneseq
    %v41 = vshrl.u32 %v40, 7
    %v42 = vsub.s32 0, %v41
    %v43 = vrot.slane %v38, %v42
    %v44 = vlaneseq
    %v45 = vshrl.u32 %v44, 7
    %v46 = vsub.s32 1, %v45
    %v47 = vrot.slane %v38, %v46
    %v48 = vlaneseq
    %v49 = vshrl.u32 %v48, 7
    %v50 = vsub.s32 2, %v49
    %v51 = vrot.slane %v38, %v50
    %v52 = vlaneseq
    %v53 = vshrl.u32 %v52, 7
    %v54 = vsub.s32 3, %v53
    %v55 = vrot.slane %v38, %v54
    %v56 = vlaneseq
    %v57 = vshrl.u32 %v56, 7
    %v58 = vsub.s32 4, %v57
    %v59 = vrot.slane %v38, %v58
    %v60 = vlaneseq
    %v61 = vshrl.u32 %v60, 7
    %v62 = vsub.s32 5, %v61
    %v63 = vrot.slane %v38, %v62
    %v64 = vcombine.low %v43, %v47
    %v65 = vcombine.low %v51, %v55
    %v67 = vunpack.c.l.s4 1983009808
    %v68 = vunpack.c.0.s8 %v67
    %v69 = vlaneseq
    %v70 = vshrl.u32 %v69, 7
    %v71 = vsub.s32 %v68, %v70
    %v72 = vrot.slane %v64, %v71
    %v74 = vunpack.c.l.s4 1983009808
    %v75 = vunpack.c.0.s8 %v74
    %v76 = vlaneseq
    %v77 = vshrl.u32 %v76, 7
    %v78 = vsub.s32 %v75, %v77
    %v79 = vrot.slane %v65, %v78
    %v80 = vcombine.low %v72, %v79
    %v81 = vcombine.low %v59, %v63
    %v83 = vunpack.c.l.s4 1983009808
    %v84 = vunpack.c.0.s8 %v83
    %v85 = vlaneseq
    %v86 = vshrl.u32 %v85, 7
    %v87 = vsub.s32 %v84, %v86
    %v88 = vrot.slane %v81, %v87
    %v91 = vadd.f32 %v36, %v80
    %v92 = vadd.f32 %v37, %v88
    %93 = vst [vmem:[#allocation7] sm:$0xff] %v91
    %94 = vst [vmem:[#allocation7 + $0x8] sm:$0xf] %v92
    // Predicated region
    $region18: #{tpu_custom_call.1} parent=1 // pred_check
      _
    $region19: #{tpu_custom_call.1} parent=1 // pred_check_branch
      %96 = sbr.rel (0) target = $region21
    $region20: #{tpu_custom_call.1} parent=1 // pred_region
      %s98 = ssub.s32 192, 192
      %99 = vsyncadd [#allocation4], %s98
      %s101 = sshll.u32 [#allocation7], 4
      %s102 = int_to_ptr.vmem [resolvable:$true] %s101
      %104 = dma.vmem_to_hbm [thread:$0]  %s102, 192, %s2, [#allocation4]
    $region21: #{tpu_custom_call.1} parent=1 // pred_fallthru
      _
    // Predicated region
    $region22: #{tpu_custom_call.1} parent=1 // pred_check
      _
    $region23: #{tpu_custom_call.1} parent=1 // pred_check_branch
      %106 = sbr.rel (0) target = $region25
    $region24: #{tpu_custom_call.1} parent=1 // pred_region
      %107 = dma.done [#allocation4], 192
    $region25: #{tpu_custom_call.1} parent=1 // pred_fallthru
      _
    %108 = vsyncpa [#allocation3], 1
    %109 = vsyncpa [#allocation6], 1
    %110 = vsyncpa [#allocation4], 1

</llo_original>
